<compile_context>
chip_gen: v7x
topology: tpu7x:2x2x1
jax: 0.10.0
libtpu: 0.0.40
codegen_flags: <defaults>
</compile_context>

<pallas_src>
import functools

import jax
import jax.numpy as jnp
from jax.experimental import pallas as pl
from jax.experimental.pallas import tpu as pltpu

LANE = 128


def _tensorcores_per_chip() -> int:
    """2 on dual-TensorCore v7x, 1 on v5e/v6e.  Defensive: default to 1."""
    try:
        kind = jax.devices()[0].device_kind.lower()
    except Exception:
        return 1
    # v7x is the only dual-TC generation we target ("TPU7x"/"TPU v7x" kinds).
    return 2 if "7" in kind else 1


def _tanh_l1_partial_kernel(x_ref, y_ref, acc_ref, *, steps, tm, rows,
                            may_have_partial):
    p = pl.program_id(0)
    s = pl.program_id(1)

    # Zero this core's (8,128) accumulator at the start of its reduction loop.
    @pl.when(s == 0)
    def _():
        acc_ref[...] = jnp.zeros_like(acc_ref)

    # Cast in-kernel: HBM traffic stays at native input width (e.g. bf16).
    xf = x_ref[...].astype(jnp.float32)
    yf = y_ref[...].astype(jnp.float32)
    diff = jnp.abs(jnp.tanh(xf) - jnp.tanh(yf))

    def _accum(d):
        # Per-step sublane-block reduction: (tm,128) -> (tm//8, 8, 128)
        # -> sum(axis=0).  Each (8,128) slab is one vreg, so this is a chain
        # of plain VPU vector adds into a single-vreg accumulator (no XLU
        # lane reduce, no (tm,128) read-modify-write VMEM traffic).
        acc_ref[...] += d.reshape(tm // 8, 8, LANE).sum(axis=0)

    if may_have_partial:
        base_row = (p * steps + s) * tm
        is_partial = base_row + tm > rows

        # Hot path: full block, no mask work at runtime.
        @pl.when(jnp.logical_not(is_partial))
        def _():
            _accum(diff)

        # Cold path (last block / clamped duplicate only): mask ragged rows.
        # Keep jnp.where (NOT diff*mask): out-of-bounds block rows may hold
        # NaN garbage and where() discards the unselected branch.
        @pl.when(is_partial)
        def _():
            row_ids = jax.lax.broadcasted_iota(jnp.int32, diff.shape, 0)
            _accum(jnp.where(base_row + row_ids < rows, diff, 0.0))
    else:
        _accum(diff)


def tanh_l1_loss(x, y, *, tm=2048):
    """Pallas equivalent of torch.mean(torch.abs(torch.tanh(x) - torch.tanh(y)))."""
    assert x.shape == y.shape, "x and y must have the same shape"
    n_elems = x.size
    assert n_elems > 0

    xf = x.reshape(-1)
    yf = y.reshape(-1)

    # Lane-dense (rows,128) view, padded up to the dtype's sublane-packing
    # multiple (8 for f32, 16 for bf16, 32 for int8/fp8).  Padding contributes
    # tanh(0)-tanh(0)=0, and in the common f32 NCHW case (numel % 1024 == 0)
    # no pad copy happens at all -- just a free reshape.
    itemsize = jnp.dtype(x.dtype).itemsize
    packing = max(1, 4 // itemsize) * 8
    rows = pl.cdiv(n_elems, LANE)
    rows_p = pl.cdiv(rows, packing) * packing
    if rows_p * LANE != n_elems:
        pad = rows_p * LANE - n_elems
        xf = jnp.pad(xf, (0, pad))
        yf = jnp.pad(yf, (0, pad))
    x2 = xf.reshape(rows_p, LANE)
    y2 = yf.reshape(rows_p, LANE)

    # Row tile: requested size rounded to the packing multiple, clamped to data.
    tm_eff = min(max(packing, (tm // packing) * packing), rows_p)
    total_blocks = pl.cdiv(rows_p, tm_eff)

    # Parallel split only where there are two TensorCores to feed (v7x).
    # On single-TC v5e/v6e this stays a plain 1 x steps reduction loop.
    # NOTE: if profiling shows plain "parallel" does not shard across v7x's
    # two TCs, switch the first axis to pltpu.CORE_PARALLEL semantics.
    n_cores = _tensorcores_per_chip()
    n_par = n_cores if total_blocks >= n_cores else 1
    steps = pl.cdiv(total_blocks, n_par)
    may_have_partial = (n_par * steps * tm_eff) > rows_p

    def in_index_map(p, s):
        # Clamp so grid points past the last real block re-read a valid block;
        # their contribution is fully masked to zero in-kernel.
        return (jnp.minimum(p * steps + s, total_blocks - 1), 0)

    kernel = functools.partial(
        _tanh_l1_partial_kernel,
        steps=steps,
        tm=tm_eff,
        rows=rows_p,
        may_have_partial=may_have_partial,
    )

    partials = pl.pallas_call(
        kernel,
        out_shape=jax.ShapeDtypeStruct((n_par * 8, LANE), jnp.float32),
        grid_spec=pltpu.PrefetchScalarGridSpec(
            num_scalar_prefetch=0,
            grid=(n_par, steps),
            in_specs=[
                pl.BlockSpec((tm_eff, LANE), in_index_map),
                pl.BlockSpec((tm_eff, LANE), in_index_map),
            ],
            # Same block index across the reduction axis -> VMEM-resident
            # single-vreg accumulator; one (8,128) block per parallel core.
            out_specs=pl.BlockSpec((8, LANE), lambda p, s: (p, 0)),
        ),
        compiler_params=pltpu.CompilerParams(
            dimension_semantics=("parallel", "arbitrary"),
            vmem_limit_bytes=32 * 1024 * 1024,
        ),
        cost_estimate=pl.CostEstimate(
            flops=5 * n_elems,
            transcendentals=2 * n_elems,
            bytes_accessed=2 * n_elems * itemsize + n_par * 8 * LANE * 4,
        ),
    )(x2, y2)

    # Tiny (n_par*8, 128) final reduce + mean stays in JAX.
    total = jnp.sum(partials)
    return (total / jnp.float32(n_elems)).astype(x.dtype)


if __name__ == "__main__":
    key = jax.random.PRNGKey(0)
    kx, ky = jax.random.split(key)

    # Primary case: NCHW batch=2, channels=4, spatial=16x16.
    x = jax.random.normal(kx, (2, 4, 16, 16), dtype=jnp.float32)
    y = jax.random.normal(ky, (2, 4, 16, 16), dtype=jnp.float32)
    loss = jax.block_until_ready(tanh_l1_loss(x, y))
    ref = jnp.mean(jnp.abs(jnp.tanh(x) - jnp.tanh(y)))
    assert jnp.allclose(loss, ref, atol=1e-5, rtol=1e-5), (loss, ref)

    # Ragged grid (24 rows, 16-row tile): exercises the pl.when-gated tail mask.
    x2 = jax.random.normal(kx, (2, 3, 16, 32), dtype=jnp.float32)
    y2 = jax.random.normal(ky, (2, 3, 16, 32), dtype=jnp.float32)
    loss2 = jax.block_until_ready(tanh_l1_loss(x2, y2, tm=16))
    ref2 = jnp.mean(jnp.abs(jnp.tanh(x2) - jnp.tanh(y2)))
    assert jnp.allclose(loss2, ref2, atol=1e-5, rtol=1e-5), (loss2, ref2)

    # numel not a multiple of 128: exercises the zero-pad path.
    x3 = jax.random.normal(kx, (3, 5, 7), dtype=jnp.float32)
    y3 = jax.random.normal(ky, (3, 5, 7), dtype=jnp.float32)
    loss3 = jax.block_until_ready(tanh_l1_loss(x3, y3))
    ref3 = jnp.mean(jnp.abs(jnp.tanh(x3) - jnp.tanh(y3)))
    assert jnp.allclose(loss3, ref3, atol=1e-5, rtol=1e-5), (loss3, ref3)

    print("KERNEL_OK")
</pallas_src>

<mosaic_0001>
module attributes {stable_mosaic.version = 11 : i64} {
  func.func @_tanh_l1_partial_kernel(%arg0: i32, %arg1: i32, %arg2: memref<16x128xf32, #tpu.memory_space<vmem>>, %arg3: memref<16x128xf32, #tpu.memory_space<vmem>>, %arg4: memref<8x128xf32, #tpu.memory_space<vmem>>) attributes {dimension_semantics = [#tpu.dimension_semantics<parallel>, #tpu.dimension_semantics<arbitrary>], iteration_bounds = array<i64: 1, 1>, scalar_prefetch = 0 : i64, scratch_operands = 0 : i64, tpu.core_type = #tpu.core_type<tc>, window_params = [{transform_indices = @transform_0, window_bounds = array<i64: 16, 128>}, {transform_indices = @transform_1, window_bounds = array<i64: 16, 128>}, {transform_indices = @transform_2, window_bounds = array<i64: 8, 128>}]} {
    %c0_i32 = arith.constant 0 : i32
    %0 = arith.cmpi eq, %arg1, %c0_i32 : i32
    %1 = arith.extui %0 : i1 to i32
    %c0_i32_0 = arith.constant 0 : i32
    %2 = arith.cmpi ne, %1, %c0_i32_0 : i32
    scf.if %2 {
      %cst_8 = arith.constant 0.000000e+00 : f32
      %14 = vector.broadcast %cst_8 : f32 to vector<8x128xf32>
      %c0_9 = arith.constant 0 : index
      %c0_10 = arith.constant 0 : index
      %15 = vector.load %arg4[%c0_9, %c0_10] : memref<8x128xf32, #tpu.memory_space<vmem>>, vector<8x128xf32>
      tpu.vector_store %arg4[%c0_9, %c0_10], %14 {strides = array<i32>} : memref<8x128xf32, #tpu.memory_space<vmem>>, vector<8x128xf32>,
    } else {
    }
    %c0 = arith.constant 0 : index
    %c0_1 = arith.constant 0 : index
    %3 = vector.load %arg2[%c0, %c0_1] : memref<16x128xf32, #tpu.memory_space<vmem>>, vector<16x128xf32>
    %c0_2 = arith.constant 0 : index
    %c0_3 = arith.constant 0 : index
    %4 = vector.load %arg3[%c0_2, %c0_3] : memref<16x128xf32, #tpu.memory_space<vmem>>, vector<16x128xf32>
    %5 = math.tanh %3 : vector<16x128xf32>
    %6 = math.tanh %4 : vector<16x128xf32>
    %7 = arith.subf %5, %6 : vector<16x128xf32>
    %8 = math.absf %7 : vector<16x128xf32>
    %c0_4 = arith.constant 0 : index
    %c0_5 = arith.constant 0 : index
    %9 = vector.load %arg4[%c0_4, %c0_5] : memref<8x128xf32, #tpu.memory_space<vmem>>, vector<8x128xf32>
    %10 = vector.shape_cast %8 : vector<16x128xf32> to vector<2x8x128xf32>
    %cst = arith.constant dense<0.000000e+00> : vector<8x128xf32>
    %11 = vector.multi_reduction <add>, %10, %cst [0] : vector<2x8x128xf32> to vector<8x128xf32>
    %12 = arith.addf %9, %11 : vector<8x128xf32>
    %c0_6 = arith.constant 0 : index
    %c0_7 = arith.constant 0 : index
    %13 = vector.load %arg4[%c0_6, %c0_7] : memref<8x128xf32, #tpu.memory_space<vmem>>, vector<8x128xf32>
    tpu.vector_store %arg4[%c0_6, %c0_7], %12 {strides = array<i32>} : memref<8x128xf32, #tpu.memory_space<vmem>>, vector<8x128xf32>,
    return
  }
  func.func @transform_0(%arg0: i32, %arg1: i32) -> (i32, i32) {
    %c1_i32 = arith.constant 1 : i32
    %0 = arith.muli %arg0, %c1_i32 : i32
    %1 = arith.addi %0, %arg1 : i32
    %c0_i32 = arith.constant 0 : i32
    %2 = arith.minsi %1, %c0_i32 : i32
    %c0_i32_0 = arith.constant 0 : i32
    %c0_i32_1 = arith.constant 0 : i32
    return %2, %c0_i32_0 : i32, i32
  }
  func.func @transform_1(%arg0: i32, %arg1: i32) -> (i32, i32) {
    %c1_i32 = arith.constant 1 : i32
    %0 = arith.muli %arg0, %c1_i32 : i32
    %1 = arith.addi %0, %arg1 : i32
    %c0_i32 = arith.constant 0 : i32
    %2 = arith.minsi %1, %c0_i32 : i32
    %c0_i32_0 = arith.constant 0 : i32
    %c0_i32_1 = arith.constant 0 : i32
    return %2, %c0_i32_0 : i32, i32
  }
  func.func @transform_2(%arg0: i32, %arg1: i32) -> (i32, i32) {
    %c0_i32 = arith.constant 0 : i32
    %c0_i32_0 = arith.constant 0 : i32
    return %arg0, %c0_i32 : i32, i32
  }
}

</mosaic_0001>

<llo_original>
// kernel: tpu_custom_call.1
$region0: #{tpu_custom_call.1}
  #allocation0 [shape = 'u32[]', space=smem, size = 0x4, offset = 0x4, fixed_abs, tag = 'smem constant byte address 0x4 - core index']
  #allocation1 [shape = 'u32[144,128]{1,0:T(1,128)}', space=vmem, size = 0x12000, scoped, tag = 'internal scratch']
  %s0 = inlined_call_operand.hbm [shape: f32[16,128], index: 0, kind: input, shape index: {}]
  %s1 = inlined_call_operand.hbm [shape: f32[16,128], index: 1, kind: input, shape index: {}]
  %s2 = inlined_call_operand.hbm [shape: f32[8,128], index: 2, kind: output, shape index: {}]
  %s3 = sld [smem:[#allocation0]]
  $region30: #{tpu_custom_call.1} parent=0
    _
  %s5 = ssub.s32 1, %s3
  %s6 = scalar_select 0, %s5, %s3
  $region1: #{tpu_custom_call.1} parent=0
    #allocation2 [shape = 'u8[8192]{0}', space=vmem, size = 0x2000, scoped, tag = 'input window, operand 0, single buffered']
    #allocation3 [shape = 's32[1]{0}', space=sflag, size = 0x4, scoped, tag = 'scoped memory for tpu_custom_call.1']
    #allocation4 [shape = 's32[1]{0}', space=sflag, size = 0x4, scoped, tag = 'scoped memory for tpu_custom_call.1']
    #allocation5 [shape = 'u8[8192]{0}', space=vmem, size = 0x2000, scoped, tag = 'input window, operand 1, single buffered']
    #allocation6 [shape = 's32[1]{0}', space=sflag, size = 0x4, scoped, tag = 'scoped memory for tpu_custom_call.1']
    #allocation7 [shape = 'u8[4096]{0}', space=vmem, size = 0x1000, scoped, tag = 'output window, operand 0, single buffered']
    %7 = vsyncpa [#allocation3], 0
    %8 = vsyncpa [#allocation6], 0
    %9 = vsyncpa [#allocation4], 0
    // Predicated region
    $region2: #{tpu_custom_call.1} parent=1 // pred_check
      _
    $region3: #{tpu_custom_call.1} parent=1 // pred_check_branch
      %11 = sbr.rel (0) target = $region5
    $region4: #{tpu_custom_call.1} parent=1 // pred_region
      %s12 = sadd.s32 0, 0
      %p13 = scmp.lt.s32.totalorder %s12, 0
      %s14 = scalar_select %p13, %s12, 0
      %s15 = smul.u32 2, %s14
      %s17 = ssub.s32 256, 256
      %18 = vsyncadd [#allocation3], %s17
      %s19 = smul.addr %s15, 128
      %s20 = scalar_lea.hbm %s0, %s19
      %s21 = sshll.u32 [#allocation2], 4
      %s22 = int_to_ptr.vmem [resolvable:$true] %s21
      %27 = dma.hbm_to_vmem [thread:$0]  %s20, 256, %s22, [#allocation3], 128, 128, 8
    $region5: #{tpu_custom_call.1} parent=1 // pred_fallthru
      _
    // Predicated region
    $region6: #{tpu_custom_call.1} parent=1 // pred_check
      _
    $region7: #{tpu_custom_call.1} parent=1 // pred_check_branch
      %29 = sbr.rel (0) target = $region9
    $region8: #{tpu_custom_call.1} parent=1 // pred_region
      %s30 = sadd.s32 0, 0
      %p31 = scmp.lt.s32.totalorder %s30, 0
      %s32 = scalar_select %p31, %s30, 0
      %s33 = smul.u32 2, %s32
      %s35 = ssub.s32 256, 256
      %36 = vsyncadd [#allocation6], %s35
      %s37 = smul.addr %s33, 128
      %s38 = scalar_lea.hbm %s1, %s37
      %s39 = sshll.u32 [#allocation5], 4
      %s40 = int_to_ptr.vmem [resolvable:$true] %s39
      %45 = dma.hbm_to_vmem [thread:$0]  %s38, 256, %s40, [#allocation6], 128, 128, 8
    $region9: #{tpu_custom_call.1} parent=1 // pred_fallthru
      _
    // Predicated region
    $region10: #{tpu_custom_call.1} parent=1 // pred_check
      _
    $region11: #{tpu_custom_call.1} parent=1 // pred_check_branch
      %47 = sbr.rel (0) target = $region13
    $region12: #{tpu_custom_call.1} parent=1 // pred_region
      %48 = dma.done [#allocation3], 256
    $region13: #{tpu_custom_call.1} parent=1 // pred_fallthru
      _
    // Predicated region
    $region14: #{tpu_custom_call.1} parent=1 // pred_check
      _
    $region15: #{tpu_custom_call.1} parent=1 // pred_check_branch
      %50 = sbr.rel (0) target = $region17
    $region16: #{tpu_custom_call.1} parent=1 // pred_region
      %51 = dma.done [#allocation6], 256
    $region17: #{tpu_custom_call.1} parent=1 // pred_fallthru
      _
    %s52 = sadd.s32 0, 0
    %p53 = scmp.lt.s32.totalorder %s52, 0
    %s54 = scalar_select %p53, %s52, 0
    %s55 = smul.u32 2, %s54
    %s56 = sadd.s32 0, 0
    %p57 = scmp.lt.s32.totalorder %s56, 0
    %s58 = scalar_select %p57, %s56, 0
    %s59 = smul.u32 2, %s58
    %p60 = scmp.eq.s32.totalorder 0, 0
    // Predicated region
    $region18: #{tpu_custom_call.1} parent=1 // pred_check
      %p61 = pneg %p60
    $region19: #{tpu_custom_call.1} parent=1 // pred_check_branch
      %63 = sbr.rel (%p61) target = $region21
    $region20: #{tpu_custom_call.1} parent=1 // pred_region
      %64 = vst [vmem:[#allocation7] sm:$0xff] 0.0
    $region21: #{tpu_custom_call.1} parent=1 // pred_fallthru
      _
    %v65 = vld [vmem:[#allocation2] sm:$0xff]
    %v66 = vld [vmem:[#allocation2 + $0x8] sm:$0xff]
    %v67 = vld [vmem:[#allocation5] sm:$0xff]
    %v68 = vld [vmem:[#allocation5 + $0x8] sm:$0xff]
    %v69 = vtanh.pop %v65
    %v70 = vtanh.pop %v66
    %v71 = vtanh.pop %v67
    %v72 = vtanh.pop %v68
    %v73 = vsub.f32 %v69, %v71
    %v74 = vsub.f32 %v70, %v72
    %v75 = vand.u32 2147483647, %v73
    %v76 = vand.u32 2147483647, %v74
    %v77 = vld [vmem:[#allocation7] sm:$0xff]
    %v78 = vadd.f32 %v75, %v76
    %v79 = vadd.f32 %v77, %v78
    %80 = vst [vmem:[#allocation7] sm:$0xff] %v79
    // Predicated region
    $region22: #{tpu_custom_call.1} parent=1 // pred_check
      _
    $region23: #{tpu_custom_call.1} parent=1 // pred_check_branch
      %82 = sbr.rel (0) target = $region25
    $region24: #{tpu_custom_call.1} parent=1 // pred_region
      %s84 = ssub.s32 128, 128
      %85 = vsyncadd [#allocation4], %s84
      %s87 = sshll.u32 [#allocation7], 4
      %s88 = int_to_ptr.vmem [resolvable:$true] %s87
      %90 = dma.vmem_to_hbm [thread:$0]  %s88, 128, %s2, [#allocation4]
    $region25: #{tpu_custom_call.1} parent=1 // pred_fallthru
      _
    // Predicated region
    $region26: #{tpu_custom_call.1} parent=1 // pred_check
      _
    $region27: #{tpu_custom_call.1} parent=1 // pred_check_branch
      %92 = sbr.rel (0) target = $region29
    $region28: #{tpu_custom_call.1} parent=1 // pred_region
      %93 = dma.done [#allocation4], 128
    $region29: #{tpu_custom_call.1} parent=1 // pred_fallthru
      _
    %94 = vsyncpa [#allocation3], 1
    %95 = vsyncpa [#allocation6], 1
    %96 = vsyncpa [#allocation4], 1

</llo_original>
